<compile_context>
chip_gen: v7x
topology: tpu7x:2x2x1
jax: 0.10.0
libtpu: 0.0.40
codegen_flags: <defaults>
</compile_context>

<pallas_src>
import functools

import jax
import jax.numpy as jnp
from jax.experimental import pallas as pl
from jax.experimental.pallas import tpu as pltpu

NEG_SLOPE = 0.01   # nn.LeakyReLU() default negative_slope
_SUBLANE = 8       # f32 sublane tile
_LANE = 128        # lane width


def _leaky_relu(x):
    return jnp.where(x > 0, x, NEG_SLOPE * x)


def _round_up(x, m):
    return ((x + m - 1) // m) * m


def fc_encoder_kernel(x_ref, w1_ref, b1_ref, w2_ref, b2_ref, o_ref, *,
                      compute_dtype):
    # Layer 1: Linear(input -> hidden) + LeakyReLU (f32 accumulation on MXU).
    h = jnp.dot(x_ref[...].astype(compute_dtype),
                w1_ref[...].astype(compute_dtype),
                preferred_element_type=jnp.float32)
    h = _leaky_relu(h + b1_ref[...])           # (1, H) broadcasts over batch
    # Layer 2: Linear(hidden -> output) + LeakyReLU.
    y = jnp.dot(h.astype(compute_dtype),
                w2_ref[...].astype(compute_dtype),
                preferred_element_type=jnp.float32)
    y = _leaky_relu(y + b2_ref[...])
    o_ref[...] = y.astype(o_ref.dtype)


def _choose_batch_tile(b_pad, f, h, o, vmem_budget):
    """Largest batch tile fitting the VMEM budget; prefer >=2 grid steps."""
    itemsize = 4  # worst case: f32 resident footprint
    weight_bytes = (f * h + h * o + h + o) * itemsize
    # Per batch row: 2x-buffered x tile + 2x-buffered out tile + f32 `h` staging.
    per_row = (2 * f + 2 * o + h) * itemsize
    avail = max(vmem_budget - weight_bytes - (2 << 20), per_row * _SUBLANE)
    tb_cap = int(min(512, avail // per_row))   # 512 also caps vreg spill of `h`
    tb_cap = max(_SUBLANE, (tb_cap // _SUBLANE) * _SUBLANE)
    n_tiles = max(1, -(-b_pad // tb_cap))
    # >=2 steps => DMA/compute pipelining + megacore sharding on v7x's 2 TCs.
    if n_tiles == 1 and b_pad >= 2 * _SUBLANE:
        n_tiles = 2
    tb = _round_up(-(-b_pad // n_tiles), _SUBLANE)
    return tb, n_tiles, weight_bytes + per_row * tb


def fc_encoder_ref(x, w1, b1, w2, b2):
    h = _leaky_relu(x @ w1 + b1.reshape(1, -1))
    return _leaky_relu(h @ w2 + b2.reshape(1, -1))


def fc_encoder(x, w1, b1, w2, b2, *, tb=None, use_bf16=False,
               vmem_budget=32 << 20, min_batch_for_pallas=0):
    """Fused FCEncoder forward: LeakyReLU(LeakyReLU(x@w1+b1)@w2+b2).

    x: [B, input]; w1: [input, hidden]; b1: [hidden]|[1,hidden];
    w2: [hidden, output]; b2: [output]|[1,output].
    """
    B, F = x.shape
    H = w1.shape[1]
    O = w2.shape[1]
    b1 = b1.reshape(1, H)
    b2 = b2.reshape(1, O)

    # At tiny problem sizes a plain XLA fusion has lower fixed overhead than a
    # pallas_call; allow dispatching around the kernel (default: always Pallas).
    if B < min_batch_for_pallas:
        return fc_encoder_ref(x, w1, b1, w2, b2)

    # Lane-dense output stores: pad output features to a multiple of 128.
    O_pad = _round_up(O, _LANE)
    if O_pad != O:
        w2 = jnp.pad(w2, ((0, 0), (0, O_pad - O)))
        b2 = jnp.pad(b2, ((0, 0), (0, O_pad - O)))

    # Pad batch to the sublane, pick a tile, then pad to a whole tile count.
    b_pad = _round_up(B, _SUBLANE)
    if tb is None:
        tb, n_tiles, vmem_used = _choose_batch_tile(b_pad, F, H, O_pad, vmem_budget)
    else:
        tb = _round_up(tb, _SUBLANE)
        n_tiles = max(1, -(-b_pad // tb))
        vmem_used = 4 * (F * H + H * O_pad + H + O_pad
                         + tb * (2 * F + 2 * O_pad + H))
    b_pad = tb * n_tiles
    if b_pad != B:
        x = jnp.pad(x, ((0, b_pad - B), (0, 0)))

    compute_dtype = jnp.bfloat16 if use_bf16 else jnp.float32
    kernel = functools.partial(fc_encoder_kernel, compute_dtype=compute_dtype)

    # Resident operands: constant index_map + single buffer (no pointless
    # double-buffering of weights — matters once hidden/output grow large).
    def _resident(shape):
        return pl.BlockSpec(shape, lambda i: (0, 0),
                            pipeline_mode=pl.Buffered(1))

    flops = 2 * b_pad * (F * H + H * O_pad)
    bytes_accessed = 4 * (b_pad * F + F * H + H + H * O_pad + O_pad
                          + b_pad * O_pad)

    out = pl.pallas_call(
        kernel,
        out_shape=jax.ShapeDtypeStruct((b_pad, O_pad), x.dtype),
        grid_spec=pltpu.PrefetchScalarGridSpec(
            num_scalar_prefetch=0,
            grid=(n_tiles,),
            in_specs=[
                pl.BlockSpec((tb, F), lambda i: (i, 0)),   # x tile (pipelined)
                _resident((F, H)),                         # W1 (resident)
                _resident((1, H)),                         # b1
                _resident((H, O_pad)),                     # W2 (resident)
                _resident((1, O_pad)),                     # b2
            ],
            out_specs=pl.BlockSpec((tb, O_pad), lambda i: (i, 0)),
        ),
        compiler_params=pltpu.CompilerParams(
            dimension_semantics=("parallel",),
            # Explicit budget: fits v7x's 64 MiB VMEM as well as v5e/v6e's 128.
            vmem_limit_bytes=int(min(max(vmem_used + (4 << 20), 32 << 20),
                                     48 << 20)),
        ),
        cost_estimate=pl.CostEstimate(flops=flops, transcendentals=0,
                                      bytes_accessed=bytes_accessed),
    )(x, w1, b1, w2, b2)

    return out[:B, :O]


if __name__ == "__main__":
    # FCEncoder(input_size=32, hidden_size=64, output_size=128) at small batch.
    # TODO(synk): batch_norm / dropout branches of FCEncoder are default-off in
    # the reference module and are not implemented here.
    B, IN, HID, OUT = 8, 32, 64, 128

    key = jax.random.PRNGKey(0)
    kx, kw1, kb1, kw2, kb2 = jax.random.split(key, 5)

    x = jax.random.normal(kx, (B, IN), dtype=jnp.float32)

    # Deterministic init mimicking nn.Linear's U(-1/sqrt(fan_in), 1/sqrt(fan_in)).
    lim1 = 1.0 / jnp.sqrt(jnp.float32(IN))
    lim2 = 1.0 / jnp.sqrt(jnp.float32(HID))
    w1 = jax.random.uniform(kw1, (IN, HID), jnp.float32, -lim1, lim1)
    b1 = jax.random.uniform(kb1, (1, HID), jnp.float32, -lim1, lim1)
    w2 = jax.random.uniform(kw2, (HID, OUT), jnp.float32, -lim2, lim2)
    b2 = jax.random.uniform(kb2, (1, OUT), jnp.float32, -lim2, lim2)

    out = fc_encoder(x, w1, b1, w2, b2)
    out = jax.block_until_ready(out)
    ref = fc_encoder_ref(x, w1, b1, w2, b2)
    assert out.shape == (B, OUT)
    assert jnp.allclose(out, ref, atol=1e-5, rtol=1e-5), "mismatch vs reference"

    # Ragged batch: exercises zero-padding, >=2 grid steps (pipelined tiles).
    B2 = 20
    x2 = jax.random.normal(jax.random.PRNGKey(1), (B2, IN), dtype=jnp.float32)
    out2 = jax.block_until_ready(fc_encoder(x2, w1, b1, w2, b2))
    ref2 = fc_encoder_ref(x2, w1, b1, w2, b2)
    assert out2.shape == (B2, OUT)
    assert jnp.allclose(out2, ref2, atol=1e-5, rtol=1e-5), "mismatch (ragged)"

    print("KERNEL_OK")
</pallas_src>

<mosaic_0001>
module attributes {stable_mosaic.version = 11 : i64} {
  func.func @fc_encoder_kernel(%arg0: i32, %arg1: memref<8x32xf32, #tpu.memory_space<vmem>>, %arg2: memref<32x64xf32, #tpu.memory_space<vmem>>, %arg3: memref<1x64xf32, #tpu.memory_space<vmem>>, %arg4: memref<64x128xf32, #tpu.memory_space<vmem>>, %arg5: memref<1x128xf32, #tpu.memory_space<vmem>>, %arg6: memref<8x128xf32, #tpu.memory_space<vmem>>) attributes {dimension_semantics = [#tpu.dimension_semantics<parallel>], iteration_bounds = array<i64: 1>, scalar_prefetch = 0 : i64, scratch_operands = 0 : i64, tpu.core_type = #tpu.core_type<tc>, window_params = [{transform_indices = @transform_0, window_bounds = array<i64: 8, 32>}, {pipeline_mode = #tpu.pipeline_mode<synchronous>, transform_indices = @transform_1, window_bounds = array<i64: 32, 64>}, {pipeline_mode = #tpu.pipeline_mode<synchronous>, transform_indices = @transform_2, window_bounds = array<i64: 1, 64>}, {pipeline_mode = #tpu.pipeline_mode<synchronous>, transform_indices = @transform_3, window_bounds = array<i64: 64, 128>}, {pipeline_mode = #tpu.pipeline_mode<synchronous>, transform_indices = @transform_4, window_bounds = array<i64: 1, 128>}, {transform_indices = @transform_5, window_bounds = array<i64: 8, 128>}]} {
    %c0 = arith.constant 0 : index
    %c0_0 = arith.constant 0 : index
    %0 = vector.load %arg1[%c0, %c0_0] : memref<8x32xf32, #tpu.memory_space<vmem>>, vector<8x32xf32>
    %c0_1 = arith.constant 0 : index
    %c0_2 = arith.constant 0 : index
    %1 = vector.load %arg2[%c0_1, %c0_2] : memref<32x64xf32, #tpu.memory_space<vmem>>, vector<32x64xf32>
    %cst = arith.constant dense<0.000000e+00> : vector<8x64xf32>
    %2 = tpu.matmul %0, %1, %cst {dimension_numbers = #tpu.dot_dimension_numbers<[1], [0], [0], [1], [0, 0, 1, 1], [], []>} : vector<8x32xf32>, vector<32x64xf32>, vector<8x64xf32> -> vector<8x64xf32>
    %c0_3 = arith.constant 0 : index
    %c0_4 = arith.constant 0 : index
    %3 = vector.load %arg3[%c0_3, %c0_4] : memref<1x64xf32, #tpu.memory_space<vmem>>, vector<1x64xf32>
    %4 = vector.broadcast %3 : vector<1x64xf32> to vector<8x64xf32>
    %5 = arith.addf %2, %4 : vector<8x64xf32>
    %cst_5 = arith.constant 0.000000e+00 : f32
    %6 = vector.broadcast %cst_5 : f32 to vector<8x64xf32>
    %7 = arith.cmpf ogt, %5, %6 : vector<8x64xf32>
    %cst_6 = arith.constant 0.00999999977 : f32
    %8 = vector.broadcast %cst_6 : f32 to vector<8x64xf32>
    %9 = arith.mulf %8, %5 : vector<8x64xf32>
    %10 = arith.select %7, %5, %9 : vector<8x64xi1>, vector<8x64xf32>
    %c0_7 = arith.constant 0 : index
    %c0_8 = arith.constant 0 : index
    %11 = vector.load %arg4[%c0_7, %c0_8] : memref<64x128xf32, #tpu.memory_space<vmem>>, vector<64x128xf32>
    %cst_9 = arith.constant dense<0.000000e+00> : vector<8x128xf32>
    %12 = tpu.matmul %10, %11, %cst_9 {dimension_numbers = #tpu.dot_dimension_numbers<[1], [0], [0], [1], [0, 0, 1, 1], [], []>} : vector<8x64xf32>, vector<64x128xf32>, vector<8x128xf32> -> vector<8x128xf32>
    %c0_10 = arith.constant 0 : index
    %c0_11 = arith.constant 0 : index
    %13 = vector.load %arg5[%c0_10, %c0_11] : memref<1x128xf32, #tpu.memory_space<vmem>>, vector<1x128xf32>
    %14 = vector.broadcast %13 : vector<1x128xf32> to vector<8x128xf32>
    %15 = arith.addf %12, %14 : vector<8x128xf32>
    %cst_12 = arith.constant 0.000000e+00 : f32
    %16 = vector.broadcast %cst_12 : f32 to vector<8x128xf32>
    %17 = arith.cmpf ogt, %15, %16 : vector<8x128xf32>
    %cst_13 = arith.constant 0.00999999977 : f32
    %18 = vector.broadcast %cst_13 : f32 to vector<8x128xf32>
    %19 = arith.mulf %18, %15 : vector<8x128xf32>
    %20 = arith.select %17, %15, %19 : vector<8x128xi1>, vector<8x128xf32>
    %c0_14 = arith.constant 0 : index
    %c0_15 = arith.constant 0 : index
    %21 = vector.load %arg6[%c0_14, %c0_15] : memref<8x128xf32, #tpu.memory_space<vmem>>, vector<8x128xf32>
    tpu.vector_store %arg6[%c0_14, %c0_15], %20 {strides = array<i32>} : memref<8x128xf32, #tpu.memory_space<vmem>>, vector<8x128xf32>,
    return
  }
  func.func @transform_0(%arg0: i32) -> (i32, i32) {
    %c0_i32 = arith.constant 0 : i32
    %c0_i32_0 = arith.constant 0 : i32
    return %arg0, %c0_i32 : i32, i32
  }
  func.func @transform_1(%arg0: i32) -> (i32, i32) {
    %c0_i32 = arith.constant 0 : i32
    %c0_i32_0 = arith.constant 0 : i32
    %c0_i32_1 = arith.constant 0 : i32
    return %c0_i32, %c0_i32_0 : i32, i32
  }
  func.func @transform_2(%arg0: i32) -> (i32, i32) {
    %c0_i32 = arith.constant 0 : i32
    %c0_i32_0 = arith.constant 0 : i32
    %c0_i32_1 = arith.constant 0 : i32
    return %c0_i32, %c0_i32_0 : i32, i32
  }
  func.func @transform_3(%arg0: i32) -> (i32, i32) {
    %c0_i32 = arith.constant 0 : i32
    %c0_i32_0 = arith.constant 0 : i32
    %c0_i32_1 = arith.constant 0 : i32
    return %c0_i32, %c0_i32_0 : i32, i32
  }
  func.func @transform_4(%arg0: i32) -> (i32, i32) {
    %c0_i32 = arith.constant 0 : i32
    %c0_i32_0 = arith.constant 0 : i32
    %c0_i32_1 = arith.constant 0 : i32
    return %c0_i32, %c0_i32_0 : i32, i32
  }
  func.func @transform_5(%arg0: i32) -> (i32, i32) {
    %c0_i32 = arith.constant 0 : i32
    %c0_i32_0 = arith.constant 0 : i32
    return %arg0, %c0_i32 : i32, i32
  }
}

</mosaic_0001>

<llo_original>
// kernel: tpu_custom_call.1
$region0: #{tpu_custom_call.1}
  #allocation0 [shape = 'u32[]', space=smem, size = 0x4, offset = 0x4, fixed_abs, tag = 'smem constant byte address 0x4 - core index']
  #allocation1 [shape = 'u32[144,128]{1,0:T(1,128)}', space=vmem, size = 0x12000, scoped, tag = 'internal scratch']
  %s0 = inlined_call_operand.hbm [shape: f32[8,32], index: 0, kind: input, shape index: {}]
  %s1 = inlined_call_operand.hbm [shape: f32[32,64], index: 1, kind: input, shape index: {}]
  %s2 = inlined_call_operand.vmem [shape: f32[1,64], index: 2, kind: input, shape index: {}]
  %s3 = inlined_call_operand.hbm [shape: f32[64,128], index: 3, kind: input, shape index: {}]
  %s4 = inlined_call_operand.vmem [shape: f32[1,128], index: 4, kind: input, shape index: {}]
  %s5 = inlined_call_operand.hbm [shape: f32[8,128], index: 5, kind: output, shape index: {}]
  %s6 = sld [smem:[#allocation0]]
  $region42: #{tpu_custom_call.1} parent=0
    _
  %s8 = ssub.s32 1, %s6
  %s9 = scalar_select 0, %s8, %s6
  $region1: #{tpu_custom_call.1} parent=0
    #allocation2 [shape = 'u8[4096]{0}', space=vmem, size = 0x1000, scoped, tag = 'input window, operand 0, single buffered']
    #allocation3 [shape = 's32[1]{0}', space=sflag, size = 0x4, scoped, tag = 'scoped memory for tpu_custom_call.1']
    #allocation4 [shape = 's32[1]{0}', space=sflag, size = 0x4, scoped, tag = 'scoped memory for tpu_custom_call.1']
    #allocation5 [shape = 'u8[16384]{0}', space=vmem, size = 0x4000, scoped, tag = 'input window, operand 1, single buffered']
    #allocation6 [shape = 's32[1]{0}', space=sflag, size = 0x4, scoped, tag = 'scoped memory for tpu_custom_call.1']
    #allocation7 [shape = 'u8[32768]{0}', space=vmem, size = 0x8000, scoped, tag = 'input window, operand 3, single buffered']
    #allocation8 [shape = 'u8[4096]{0}', space=vmem, size = 0x1000, scoped, tag = 'output window, operand 0, single buffered']
    %10 = vsyncpa [#allocation3], 0
    %11 = vsyncpa [#allocation6], 0
    %12 = vsyncpa [#allocation4], 0
    // Predicated region
    $region2: #{tpu_custom_call.1} parent=1 // pred_check
      _
    $region3: #{tpu_custom_call.1} parent=1 // pred_check_branch
      %14 = sbr.rel (0) target = $region5
    $region4: #{tpu_custom_call.1} parent=1 // pred_region
      %s16 = ssub.s32 128, 128
      %17 = vsyncadd [#allocation3], %s16
      %s19 = sshll.u32 [#allocation2], 4
      %s20 = int_to_ptr.vmem [resolvable:$true] %s19
      %22 = dma.hbm_to_vmem [thread:$0]  %s0, 128, %s20, [#allocation3]
    $region5: #{tpu_custom_call.1} parent=1 // pred_fallthru
      _
    // Predicated region
    $region6: #{tpu_custom_call.1} parent=1 // pred_check
      _
    $region7: #{tpu_custom_call.1} parent=1 // pred_check_branch
      %24 = sbr.rel (0) target = $region9
    $region8: #{tpu_custom_call.1} parent=1 // pred_region
      %s26 = ssub.s32 512, 512
      %27 = vsyncadd [#allocation6], %s26
      %s28 = sshll.u32 [#allocation5], 4
      %s29 = int_to_ptr.vmem [resolvable:$true] %s28
      %34 = dma.hbm_to_vmem [thread:$0]  %s1, 512, %s29, [#allocation6], 128, 128, 8
    $region9: #{tpu_custom_call.1} parent=1 // pred_fallthru
      _
    // Predicated region
    $region10: #{tpu_custom_call.1} parent=1 // pred_check
      _
    $region11: #{tpu_custom_call.1} parent=1 // pred_check_branch
      %36 = sbr.rel (0) target = $region13
    $region12: #{tpu_custom_call.1} parent=1 // pred_region
      _
    $region13: #{tpu_custom_call.1} parent=1 // pred_fallthru
      _
    // Predicated region
    $region14: #{tpu_custom_call.1} parent=1 // pred_check
      _
    $region15: #{tpu_custom_call.1} parent=1 // pred_check_branch
      %38 = sbr.rel (0) target = $region17
    $region16: #{tpu_custom_call.1} parent=1 // pred_region
      %s40 = ssub.s32 1024, 1024
      %41 = vsyncadd [#allocation6], %s40
      %s42 = sshll.u32 [#allocation7], 4
      %s43 = int_to_ptr.vmem [resolvable:$true] %s42
      %48 = dma.hbm_to_vmem [thread:$0]  %s3, 1024, %s43, [#allocation6], 128, 128, 8
    $region17: #{tpu_custom_call.1} parent=1 // pred_fallthru
      _
    // Predicated region
    $region18: #{tpu_custom_call.1} parent=1 // pred_check
      _
    $region19: #{tpu_custom_call.1} parent=1 // pred_check_branch
      %50 = sbr.rel (0) target = $region21
    $region20: #{tpu_custom_call.1} parent=1 // pred_region
      _
    $region21: #{tpu_custom_call.1} parent=1 // pred_fallthru
      _
    // Predicated region
    $region22: #{tpu_custom_call.1} parent=1 // pred_check
      _
    $region23: #{tpu_custom_call.1} parent=1 // pred_check_branch
      %52 = sbr.rel (0) target = $region25
    $region24: #{tpu_custom_call.1} parent=1 // pred_region
      %53 = dma.done [#allocation3], 128
    $region25: #{tpu_custom_call.1} parent=1 // pred_fallthru
      _
    // Predicated region
    $region26: #{tpu_custom_call.1} parent=1 // pred_check
      _
    $region27: #{tpu_custom_call.1} parent=1 // pred_check_branch
      %55 = sbr.rel (0) target = $region29
    $region28: #{tpu_custom_call.1} parent=1 // pred_region
      %56 = dma.done [#allocation6], 512
    $region29: #{tpu_custom_call.1} parent=1 // pred_fallthru
      _
    // Predicated region
    $region30: #{tpu_custom_call.1} parent=1 // pred_check
      _
    $region31: #{tpu_custom_call.1} parent=1 // pred_check_branch
      %58 = sbr.rel (0) target = $region33
    $region32: #{tpu_custom_call.1} parent=1 // pred_region
      %59 = dma.done [#allocation6], 1024
    $region33: #{tpu_custom_call.1} parent=1 // pred_fallthru
      _
    %v60 = vld [vmem:[#allocation2] sm:$0xff]
    %v61 = vld [vmem:[#allocation5] sm:$0xff]
    %v62 = vld [vmem:[#allocation5 + $0x8] sm:$0xff]
    %v63 = vld [vmem:[#allocation5 + $0x10] sm:$0xff]
    %v64 = vld [vmem:[#allocation5 + $0x18] sm:$0xff]
    %v65 = vld [vmem:[%s2] sm:$0x1]
    %v67 = vlaneseq
    %v68 = vshrl.u32 %v67, 7
    %v69 = vsub.s32 0, %v68
    %v70 = vrot.slane %v65, %v69
    %vm72 = vcmask 261120
    %v74 = vsel %vm72, %v60, 0
    %76 = vmatprep.subr.mxu0 0.0
    %77 = vmatpush1.msra.mxu0 %v61
    %78 = vmatprep.subr.mxu0 0.0
    %79 = vmatpush1.msra.mxu0 %v62
    %80 = vmatprep.subr.mxu0 0.0
    %81 = vmatpush1.msra.mxu0 %v63
    %82 = vmatprep.subr.mxu0 0.0
    %83 = vmatpush1.msra.mxu0 %v64
    %84 = vmatprep.subr.mxu0 0.0
    %85 = vmatpush1.msra.mxu0 0.0
    %86 = vmatprep.subr.mxu0 0.0
    %87 = vmatpush1.msra.mxu0 0.0
    %88 = vmatprep.subr.mxu0 0.0
    %89 = vmatpush1.msra.mxu0 0.0
    %90 = vmatprep.subr.mxu0 0.0
    %91 = vmatpush1.msra.mxu0 0.0
    %92 = vmatprep.subr.mxu0 0.0
    %93 = vmatpush1.msra.mxu0 0.0
    %94 = vmatprep.subr.mxu0 0.0
    %95 = vmatpush1.msra.mxu0 0.0
    %96 = vmatprep.subr.mxu0 0.0
    %97 = vmatpush1.msra.mxu0 0.0
    %98 = vmatprep.subr.mxu0 0.0
    %99 = vmatpush1.msra.mxu0 0.0
    %100 = vmatprep.subr.mxu0 0.0
    %101 = vmatpush1.msra.mxu0 0.0
    %102 = vmatprep.subr.mxu0 0.0
    %103 = vmatpush1.msra.mxu0 0.0
    %104 = vmatprep.subr.mxu0 0.0
    %105 = vmatpush1.msra.mxu0 0.0
    %106 = vmatprep.subr.mxu0 0.0
    %107 = vmatpush1.msra.mxu0 0.0
    %108 = vmatprep.subr.mxu0 0.0
    %109 = vmatpush1.msra.mxu0 0.0
    %110 = vmatprep.subr.mxu0 0.0
    %111 = vmatpush1.msra.mxu0 0.0
    %112 = vmatprep.subr.mxu0 0.0
    %113 = vmatpush1.msra.mxu0 0.0
    %114 = vmatprep.subr.mxu0 0.0
    %115 = vmatpush1.msra.mxu0 0.0
    %116 = vmatprep.subr.mxu0 0.0
    %117 = vmatpush1.msra.mxu0 0.0
    %118 = vmatprep.subr.mxu0 0.0
    %119 = vmatpush1.msra.mxu0 0.0
    %120 = vmatprep.subr.mxu0 0.0
    %121 = vmatpush1.msra.mxu0 0.0
    %122 = vmatprep.subr.mxu0 0.0
    %123 = vmatpush1.msra.mxu0 0.0
    %124 = vmatprep.subr.mxu0 0.0
    %125 = vmatpush1.msra.mxu0 0.0
    %126 = vmatprep.subr.mxu0 0.0
    %127 = vmatpush1.msra.mxu0 0.0
    %128 = vmatprep.subr.mxu0 0.0
    %129 = vmatpush1.msra.mxu0 0.0
    %130 = vmatprep.subr.mxu0 0.0
    %131 = vmatpush1.msra.mxu0 0.0
    %132 = vmatprep.subr.mxu0 0.0
    %133 = vmatpush1.msra.mxu0 0.0
    %134 = vmatprep.subr.mxu0 0.0
    %135 = vmatpush1.msra.mxu0 0.0
    %136 = vmatprep.subr.mxu0 0.0
    %137 = vmatpush1.msra.mxu0 0.0
    %138 = vmatprep.subr.mxu0 0.0
    %139 = vmatpush1.msra.mxu0 0.0
    %140 = vmatprep.mubr.f32.mxu0 0.0
    %141 = vmatmul.mubr.f32.gmra.mrb[0].mxu0 %v74
    %v142 = vpop.f32.mrb[0].mxu0
    %v143 = vadd.f32 %v70, %v142
    %v144 = vpop.f32.mrb[0].mxu0
    %145 = vdwg.mxu0
    %vm146 = vcmp.gt.f32.partialorder %v143, 0.0
    %v147 = vmul.f32 %v143, 0.01
    %v148 = vsel %vm146, %v143, %v147
    %v149 = vld [vmem:[#allocation7] sm:$0xff]
    %v150 = vld [vmem:[#allocation7 + $0x8] sm:$0xff]
    %v151 = vld [vmem:[#allocation7 + $0x10] sm:$0xff]
    %v152 = vld [vmem:[#allocation7 + $0x18] sm:$0xff]
    %v153 = vld [vmem:[#allocation7 + $0x20] sm:$0xff]
    %v154 = vld [vmem:[#allocation7 + $0x28] sm:$0xff]
    %v155 = vld [vmem:[#allocation7 + $0x30] sm:$0xff]
    %v156 = vld [vmem:[#allocation7 + $0x38] sm:$0xff]
    %v157 = vld [vmem:[%s4] sm:$0x1]
    %v159 = vlaneseq
    %v160 = vshrl.u32 %v159, 7
    %v161 = vsub.s32 0, %v160
    %v162 = vrot.slane %v157, %v161
    %vm164 = vcmask 523264
    %v166 = vsel %vm164, %v148, 0
    %168 = vmatprep.subr.mxu0 0.0
    %169 = vmatpush1.msra.mxu0 %v149
    %170 = vmatprep.subr.mxu0 0.0
    %171 = vmatpush1.msra.mxu0 %v150
    %172 = vmatprep.subr.mxu0 0.0
    %173 = vmatpush1.msra.mxu0 %v151
    %174 = vmatprep.subr.mxu0 0.0
    %175 = vmatpush1.msra.mxu0 %v152
    %176 = vmatprep.subr.mxu0 0.0
    %177 = vmatpush1.msra.mxu0 %v153
    %178 = vmatprep.subr.mxu0 0.0
    %179 = vmatpush1.msra.mxu0 %v154
    %180 = vmatprep.subr.mxu0 0.0
    %181 = vmatpush1.msra.mxu0 %v155
    %182 = vmatprep.subr.mxu0 0.0
    %183 = vmatpush1.msra.mxu0 %v156
    %184 = vmatprep.subr.mxu0 0.0
    %185 = vmatpush1.msra.mxu0 0.0
    %186 = vmatprep.subr.mxu0 0.0
    %187 = vmatpush1.msra.mxu0 0.0
    %188 = vmatprep.subr.mxu0 0.0
    %189 = vmatpush1.msra.mxu0 0.0
    %190 = vmatprep.subr.mxu0 0.0
    %191 = vmatpush1.msra.mxu0 0.0
    %192 = vmatprep.subr.mxu0 0.0
    %193 = vmatpush1.msra.mxu0 0.0
    %194 = vmatprep.subr.mxu0 0.0
    %195 = vmatpush1.msra.mxu0 0.0
    %196 = vmatprep.subr.mxu0 0.0
    %197 = vmatpush1.msra.mxu0 0.0
    %198 = vmatprep.subr.mxu0 0.0
    %199 = vmatpush1.msra.mxu0 0.0
    %200 = vmatprep.subr.mxu0 0.0
    %201 = vmatpush1.msra.mxu0 0.0
    %202 = vmatprep.subr.mxu0 0.0
    %203 = vmatpush1.msra.mxu0 0.0
    %204 = vmatprep.subr.mxu0 0.0
    %205 = vmatpush1.msra.mxu0 0.0
    %206 = vmatprep.subr.mxu0 0.0
    %207 = vmatpush1.msra.mxu0 0.0
    %208 = vmatprep.subr.mxu0 0.0
    %209 = vmatpush1.msra.mxu0 0.0
    %210 = vmatprep.subr.mxu0 0.0
    %211 = vmatpush1.msra.mxu0 0.0
    %212 = vmatprep.subr.mxu0 0.0
    %213 = vmatpush1.msra.mxu0 0.0
    %214 = vmatprep.subr.mxu0 0.0
    %215 = vmatpush1.msra.mxu0 0.0
    %216 = vmatprep.subr.mxu0 0.0
    %217 = vmatpush1.msra.mxu0 0.0
    %218 = vmatprep.subr.mxu0 0.0
    %219 = vmatpush1.msra.mxu0 0.0
    %220 = vmatprep.subr.mxu0 0.0
    %221 = vmatpush1.msra.mxu0 0.0
    %222 = vmatprep.subr.mxu0 0.0
    %223 = vmatpush1.msra.mxu0 0.0
    %224 = vmatprep.subr.mxu0 0.0
    %225 = vmatpush1.msra.mxu0 0.0
    %226 = vmatprep.subr.mxu0 0.0
    %227 = vmatpush1.msra.mxu0 0.0
    %228 = vmatprep.subr.mxu0 0.0
    %229 = vmatpush1.msra.mxu0 0.0
    %230 = vmatprep.subr.mxu0 0.0
    %231 = vmatpush1.msra.mxu0 0.0
    %232 = vmatprep.mubr.f32.mxu0 0.0
    %233 = vmatmul.mubr.f32.gmra.mrb[0].mxu0 %v166
    %v234 = vpop.f32.mrb[0].mxu0
    %v235 = vadd.f32 %v162, %v234
    %v236 = vpop.f32.mrb[0].mxu0
    %237 = vdwg.mxu0
    %vm238 = vcmp.gt.f32.partialorder %v235, 0.0
    %v239 = vmul.f32 %v235, 0.01
    %v240 = vsel %vm238, %v235, %v239
    %241 = vst [vmem:[#allocation8] sm:$0xff] %v240
    // Predicated region
    $region34: #{tpu_custom_call.1} parent=1 // pred_check
      _
    $region35: #{tpu_custom_call.1} parent=1 // pred_check_branch
      %243 = sbr.rel (0) target = $region37
    $region36: #{tpu_custom_call.1} parent=1 // pred_region
      %s245 = ssub.s32 128, 128
      %246 = vsyncadd [#allocation4], %s245
      %s248 = sshll.u32 [#allocation8], 4
      %s249 = int_to_ptr.vmem [resolvable:$true] %s248
      %251 = dma.vmem_to_hbm [thread:$0]  %s249, 128, %s5, [#allocation4]
    $region37: #{tpu_custom_call.1} parent=1 // pred_fallthru
      _
    // Predicated region
    $region38: #{tpu_custom_call.1} parent=1 // pred_check
      _
    $region39: #{tpu_custom_call.1} parent=1 // pred_check_branch
      %253 = sbr.rel (0) target = $region41
    $region40: #{tpu_custom_call.1} parent=1 // pred_region
      %254 = dma.done [#allocation4], 128
    $region41: #{tpu_custom_call.1} parent=1 // pred_fallthru
      _
    %255 = vsyncpa [#allocation3], 1
    %256 = vsyncpa [#allocation6], 1
    %257 = vsyncpa [#allocation4], 1

</llo_original>
